<compile_context>
chip_gen: v5e
topology: v5e:2x2
jax: 0.10.0
libtpu: 0.0.40
codegen_flags: <defaults>
</compile_context>

<pallas_src>
import functools

import jax
import jax.numpy as jnp
from jax.experimental import pallas as pl
from jax.experimental.pallas import tpu as pltpu


def _round_up(x, m):
    return ((x + m - 1) // m) * m


def _lrp_avgpool1d_kernel(a_ref, r_ref, o_ref, *, k, inv_k, eps):
    tr, w = a_ref.shape
    tw = w // k
    # Upcast to f32 so the eps stabilizer survives bf16/fp16 inputs; cast back
    # only at the final store.
    a = a_ref[...].astype(jnp.float32)
    r = r_ref[...].astype(jnp.float32)
    if k == 1:
        z = a * inv_k + eps
        o_ref[...] = (a * ((r / z) * inv_k)).astype(o_ref.dtype)
        return
    aw = a.reshape(tr, tw, k)                   # window axis minor
    z = jnp.sum(aw, axis=-1) * inv_k + eps      # pooled activations + eps
    f = (r / z) * inv_k                         # per-window redistribution factor
    out = aw * f[:, :, None]                    # broadcast back over the window
    o_ref[...] = out.reshape(tr, w).astype(o_ref.dtype)


def _vmem_capacity_bytes():
    try:
        return int(pltpu.get_tpu_info().vmem_capacity_bytes)
    except Exception:
        return 64 * 1024 * 1024                 # conservative (v7x-sized) fallback


def relevance_propagation_avg_pool1d(a, r, *, kernel_size, eps=1e-5):
    """LRP for AvgPool1d with stride == kernel_size and padding == 0."""
    # TODO(synk): overlapping windows (stride != kernel_size) or nonzero padding
    # need a scatter-add redistribution; only the common non-overlapping case
    # is implemented here.
    N, C, L = a.shape
    k = int(kernel_size)
    L_out = r.shape[-1]
    assert r.shape[:2] == (N, C)
    assert L_out == L // k, "expected stride == kernel_size, padding == 0"

    R = N * C
    L_used = L_out * k
    itemsize = jnp.dtype(a.dtype).itemsize
    sub = {4: 8, 2: 16, 1: 32}.get(itemsize, 8)  # dtype-aware sublane multiple

    a2 = a.reshape(R, L)                         # free reshape (contiguous)
    if L_used < L:
        a2 = a2[:, :L_used]
    r2 = r.reshape(R, L_out)

    # ---- tile selection ----------------------------------------------------
    # Lane tile over pooled positions; a/out blocks are k*TW lanes wide.
    if L_out * k <= 4096:
        TW = L_out                               # full-dim block (always legal)
    else:
        TW = max(128, ((4096 // k) // 128) * 128)
    W = TW * k

    cap = _vmem_capacity_bytes()
    budget = min(3 * cap // 8, 48 * 1024 * 1024)     # working-set budget
    vmem_limit = min(cap // 2, 64 * 1024 * 1024)     # explicit scoped-VMEM limit

    # Per-row bytes: double-buffered a/r/out tiles + f32 compute temporaries.
    per_row = (2 * W + TW) * itemsize * 2 + (2 * W + TW) * 4
    tr_budget = max(sub, (budget // max(per_row, 1)) // sub * sub)

    if R <= sub:
        TR = R                                   # full-dim block (always legal)
    else:
        TR = max(sub, min((R // sub) * sub, tr_budget))
        # Keep >= 2 grid programs so both TensorCores on dual-TC chips (v7x)
        # get work; costs at most one extra ~0.35us grid step elsewhere.
        if pl.cdiv(R, TR) * pl.cdiv(L_out, TW) < 2:
            TR = max(sub, _round_up(pl.cdiv(R, 2), sub))

    grid = (pl.cdiv(R, TR), pl.cdiv(L_out, TW))

    cost = pl.CostEstimate(
        flops=5 * R * L_used,
        transcendentals=0,
        bytes_accessed=(2 * R * L_used + R * L_out) * itemsize,
    )

    out2 = pl.pallas_call(
        functools.partial(_lrp_avgpool1d_kernel, k=k, inv_k=1.0 / k, eps=float(eps)),
        out_shape=jax.ShapeDtypeStruct((R, L_used), a.dtype),
        grid_spec=pltpu.PrefetchScalarGridSpec(
            num_scalar_prefetch=0,
            grid=grid,
            in_specs=[
                pl.BlockSpec((TR, W), lambda i, j: (i, j)),   # a, natural layout
                pl.BlockSpec((TR, TW), lambda i, j: (i, j)),  # r
            ],
            out_specs=pl.BlockSpec((TR, W), lambda i, j: (i, j)),
        ),
        compiler_params=pltpu.CompilerParams(
            dimension_semantics=("parallel", "parallel"),
            vmem_limit_bytes=vmem_limit,
        ),
        cost_estimate=cost,
    )(a2, r2)

    # Positions past L_out*k get zero relevance (matches AvgPool1d's zero
    # gradient for trailing, unpooled elements).
    if L_used < L:
        out2 = jnp.pad(out2, ((0, 0), (0, L - L_used)))
    return out2.reshape(N, C, L)


def _reference(a, r, k, eps):
    """Pure-JAX reference mirroring the PyTorch LRP-AvgPool1d rule."""
    N, C, L = a.shape
    L_out = r.shape[-1]
    aw = a[..., : L_out * k].reshape(N, C, L_out, k).astype(jnp.float32)
    z = aw.sum(-1) * (1.0 / k) + eps
    s = r.astype(jnp.float32) / z
    cw = jnp.broadcast_to((s * (1.0 / k))[..., None], (N, C, L_out, k))
    c = cw.reshape(N, C, L_out * k)
    c = jnp.pad(c, ((0, 0), (0, 0), (0, L - L_out * k)))
    return (a.astype(jnp.float32) * c).astype(a.dtype)


if __name__ == "__main__":
    key = jax.random.PRNGKey(0)

    def _check(N, C, L, K, dtype=jnp.float32):
        ka, kr = jax.random.split(jax.random.fold_in(key, L * 131 + K), 2)
        L_out = L // K
        a = jax.random.normal(ka, (N, C, L), dtype=dtype)
        r = jax.random.normal(kr, (N, C, L_out), dtype=dtype)
        out = relevance_propagation_avg_pool1d(a, r, kernel_size=K, eps=1e-5)
        out = jax.block_until_ready(out)
        ref = _reference(a, r, K, 1e-5)
        assert out.shape == a.shape and out.dtype == a.dtype
        assert bool(jnp.allclose(out, ref, rtol=1e-5, atol=1e-6)), float(
            jnp.max(jnp.abs(out - ref))
        )

    # Small 1-D pooling shapes: batch=2, channels=4, length=16, kernel_size=2.
    _check(2, 4, 16, 2)
    # Trailing remainder (L % k != 0) and odd kernel size.
    _check(2, 3, 17, 3)
    # Multi-block grid path (exercises row tiling + dual-TC grid split).
    _check(4, 8, 512, 2)

    print("KERNEL_OK")
</pallas_src>

<mosaic_0001>
module attributes {stable_mosaic.version = 11 : i64} {
  func.func @_lrp_avgpool1d_kernel(%arg0: i32, %arg1: i32, %arg2: memref<8x16xf32, #tpu.memory_space<vmem>>, %arg3: memref<8x8xf32, #tpu.memory_space<vmem>>, %arg4: memref<8x16xf32, #tpu.memory_space<vmem>>) attributes {dimension_semantics = [#tpu.dimension_semantics<parallel>, #tpu.dimension_semantics<parallel>], iteration_bounds = array<i64: 1, 1>, scalar_prefetch = 0 : i64, scratch_operands = 0 : i64, tpu.core_type = #tpu.core_type<tc>, window_params = [{transform_indices = @transform_0, window_bounds = array<i64: 8, 16>}, {transform_indices = @transform_1, window_bounds = array<i64: 8, 8>}, {transform_indices = @transform_2, window_bounds = array<i64: 8, 16>}]} {
    %c0 = arith.constant 0 : index
    %c0_0 = arith.constant 0 : index
    %0 = vector.load %arg2[%c0, %c0_0] : memref<8x16xf32, #tpu.memory_space<vmem>>, vector<8x16xf32>
    %c0_1 = arith.constant 0 : index
    %c0_2 = arith.constant 0 : index
    %1 = vector.load %arg3[%c0_1, %c0_2] : memref<8x8xf32, #tpu.memory_space<vmem>>, vector<8x8xf32>
    %2 = vector.shape_cast %0 : vector<8x16xf32> to vector<8x8x2xf32>
    %cst = arith.constant dense<0.000000e+00> : vector<8x8xf32>
    %3 = vector.multi_reduction <add>, %2, %cst [2] : vector<8x8x2xf32> to vector<8x8xf32>
    %cst_3 = arith.constant 5.000000e-01 : f32
    %4 = vector.broadcast %cst_3 : f32 to vector<8x8xf32>
    %5 = arith.mulf %3, %4 : vector<8x8xf32>
    %cst_4 = arith.constant 9.99999974E-6 : f32
    %6 = vector.broadcast %cst_4 : f32 to vector<8x8xf32>
    %7 = arith.addf %5, %6 : vector<8x8xf32>
    %8 = arith.divf %1, %7 : vector<8x8xf32>
    %cst_5 = arith.constant 5.000000e-01 : f32
    %9 = vector.broadcast %cst_5 : f32 to vector<8x8xf32>
    %10 = arith.mulf %8, %9 : vector<8x8xf32>
    %11 = vector.shape_cast %10 : vector<8x8xf32> to vector<8x8x1xf32>
    %12 = vector.broadcast %11 : vector<8x8x1xf32> to vector<8x8x2xf32>
    %13 = arith.mulf %2, %12 : vector<8x8x2xf32>
    %14 = vector.shape_cast %13 : vector<8x8x2xf32> to vector<8x16xf32>
    %c0_6 = arith.constant 0 : index
    %c0_7 = arith.constant 0 : index
    %15 = vector.load %arg4[%c0_6, %c0_7] : memref<8x16xf32, #tpu.memory_space<vmem>>, vector<8x16xf32>
    tpu.vector_store %arg4[%c0_6, %c0_7], %14 {strides = array<i32>} : memref<8x16xf32, #tpu.memory_space<vmem>>, vector<8x16xf32>,
    return
  }
  func.func @transform_0(%arg0: i32, %arg1: i32) -> (i32, i32) {
    %c0_i32 = arith.constant 0 : i32
    return %arg0, %arg1 : i32, i32
  }
  func.func @transform_1(%arg0: i32, %arg1: i32) -> (i32, i32) {
    %c0_i32 = arith.constant 0 : i32
    return %arg0, %arg1 : i32, i32
  }
  func.func @transform_2(%arg0: i32, %arg1: i32) -> (i32, i32) {
    %c0_i32 = arith.constant 0 : i32
    return %arg0, %arg1 : i32, i32
  }
}

</mosaic_0001>

<llo_original>
// kernel: tpu_custom_call.1
$region0: #{tpu_custom_call.1}
  #allocation0 [shape = 'u32[]', space=smem, size = 0x4, offset = 0x4, fixed_abs, tag = 'smem constant byte address 0x4 - core index']
  #allocation1 [shape = 'u32[72,128]{1,0:T(1,128)}', space=vmem, size = 0x9000, scoped, tag = 'internal scratch']
  %s0 = inlined_call_operand.hbm [shape: f32[8,16], index: 0, kind: input, shape index: {}]
  %s1 = inlined_call_operand.hbm [shape: f32[8,8], index: 1, kind: input, shape index: {}]
  %s2 = inlined_call_operand.hbm [shape: f32[8,16], index: 2, kind: output, shape index: {}]
  %s3 = sld [smem:[#allocation0]]
  $region26: #{tpu_custom_call.1} parent=0
    _
  %s5 = ssub.s32 1, %s3
  %s6 = scalar_select 0, %s5, %s3
  $region1: #{tpu_custom_call.1} parent=0
    #allocation2 [shape = 'u8[4096]{0}', space=vmem, size = 0x1000, scoped, tag = 'input window, operand 0, single buffered']
    #allocation3 [shape = 's32[1]{0}', space=sflag, size = 0x4, scoped, tag = 'scoped memory for tpu_custom_call.1']
    #allocation4 [shape = 's32[1]{0}', space=sflag, size = 0x4, scoped, tag = 'scoped memory for tpu_custom_call.1']
    #allocation5 [shape = 'u8[4096]{0}', space=vmem, size = 0x1000, scoped, tag = 'input window, operand 1, single buffered']
    #allocation6 [shape = 's32[1]{0}', space=sflag, size = 0x4, scoped, tag = 'scoped memory for tpu_custom_call.1']
    #allocation7 [shape = 'u8[4096]{0}', space=vmem, size = 0x1000, scoped, tag = 'output window, operand 0, single buffered']
    %7 = vsyncpa [#allocation3], 0
    %8 = vsyncpa [#allocation6], 0
    %9 = vsyncpa [#allocation4], 0
    // Predicated region
    $region2: #{tpu_custom_call.1} parent=1 // pred_check
      _
    $region3: #{tpu_custom_call.1} parent=1 // pred_check_branch
      %11 = sbr.rel (0) target = $region5
    $region4: #{tpu_custom_call.1} parent=1 // pred_region
      %13 = vsyncadd [#allocation3], 0
      %s15 = sshll.u32 %s0, 4
      %s16 = int_to_ptr.hbm [resolvable:$true] %s15
      %s17 = sshll.u32 [#allocation2], 4
      %s18 = int_to_ptr.vmem [resolvable:$true] %s17
      %20 = dma.hbm_to_vmem [thread:$0]  %s16, 128, %s18, [#allocation3]
    $region5: #{tpu_custom_call.1} parent=1 // pred_fallthru
      _
    // Predicated region
    $region6: #{tpu_custom_call.1} parent=1 // pred_check
      _
    $region7: #{tpu_custom_call.1} parent=1 // pred_check_branch
      %22 = sbr.rel (0) target = $region9
    $region8: #{tpu_custom_call.1} parent=1 // pred_region
      %24 = vsyncadd [#allocation6], 0
      %s26 = sshll.u32 %s1, 4
      %s27 = int_to_ptr.hbm [resolvable:$true] %s26
      %s28 = sshll.u32 [#allocation5], 4
      %s29 = int_to_ptr.vmem [resolvable:$true] %s28
      %31 = dma.hbm_to_vmem [thread:$0]  %s27, 128, %s29, [#allocation6]
    $region9: #{tpu_custom_call.1} parent=1 // pred_fallthru
      _
    // Predicated region
    $region10: #{tpu_custom_call.1} parent=1 // pred_check
      _
    $region11: #{tpu_custom_call.1} parent=1 // pred_check_branch
      %33 = sbr.rel (0) target = $region13
    $region12: #{tpu_custom_call.1} parent=1 // pred_region
      %35 = dma.done [#allocation3], 128
    $region13: #{tpu_custom_call.1} parent=1 // pred_fallthru
      _
    // Predicated region
    $region14: #{tpu_custom_call.1} parent=1 // pred_check
      _
    $region15: #{tpu_custom_call.1} parent=1 // pred_check_branch
      %37 = sbr.rel (0) target = $region17
    $region16: #{tpu_custom_call.1} parent=1 // pred_region
      %39 = dma.done [#allocation6], 128
    $region17: #{tpu_custom_call.1} parent=1 // pred_fallthru
      _
    %v40 = vld [vmem:[#allocation2] sm:$0xff]
    %v41 = vld [vmem:[#allocation5] sm:$0xff]
    %43 = vrot.lane.b32.xlu0 %v40, 126
    %v44 = vpop.permute.xlu0 %43
    %46 = vrot.lane.b32.xlu0 %v40, 124
    %v47 = vpop.permute.xlu0 %46
    %49 = vrot.lane.b32.xlu0 %v40, 122
    %v50 = vpop.permute.xlu0 %49
    %52 = vrot.lane.b32.xlu0 %v40, 120
    %v53 = vpop.permute.xlu0 %52
    %55 = vrot.lane.b32.xlu0 %v40, 118
    %v56 = vpop.permute.xlu0 %55
    %58 = vrot.lane.b32.xlu0 %v40, 116
    %v59 = vpop.permute.xlu0 %58
    %61 = vrot.lane.b32.xlu0 %v40, 114
    %v62 = vpop.permute.xlu0 %61
    %v64 = vrot.slane %v47, 4
    %vm65 = vcmask 1047556
    %v66 = vsel %vm65, %v64, %v40
    %v67 = vrot.slane %v40, 4
    %v68 = vsel %vm65, %v47, %v67
    %v70 = vunpack.c.l.s4 1983009808
    %v71 = vunpack.c.0.s8 %v70
    %v72 = vperm.slane %v66, %v71
    %v74 = vunpack.c.l.s4 1983009808
    %v75 = vunpack.c.0.s8 %v74
    %v76 = vperm.slane %v68, %v75
    %v77 = vrot.slane %v50, 4
    %v78 = vsel %vm65, %v77, %v44
    %v79 = vrot.slane %v44, 4
    %v80 = vsel %vm65, %v50, %v79
    %v82 = vunpack.c.l.s4 1983009808
    %v83 = vunpack.c.0.s8 %v82
    %v84 = vperm.slane %v78, %v83
    %v86 = vunpack.c.l.s4 1983009808
    %v87 = vunpack.c.0.s8 %v86
    %v88 = vperm.slane %v80, %v87
    %v89 = vrot.slane %v59, 4
    %v90 = vsel %vm65, %v89, %v53
    %v91 = vrot.slane %v53, 4
    %v92 = vsel %vm65, %v59, %v91
    %v94 = vunpack.c.l.s4 1983009808
    %v95 = vunpack.c.0.s8 %v94
    %v96 = vperm.slane %v90, %v95
    %v98 = vunpack.c.l.s4 1983009808
    %v99 = vunpack.c.0.s8 %v98
    %v100 = vperm.slane %v92, %v99
    %v101 = vrot.slane %v62, 4
    %v102 = vsel %vm65, %v101, %v56
    %v103 = vrot.slane %v56, 4
    %v104 = vsel %vm65, %v62, %v103
    %v106 = vunpack.c.l.s4 1983009808
    %v107 = vunpack.c.0.s8 %v106
    %v108 = vperm.slane %v102, %v107
    %v110 = vunpack.c.l.s4 1983009808
    %v111 = vunpack.c.0.s8 %v110
    %v112 = vperm.slane %v104, %v111
    %v113 = vrot.slane %v84, 4
    %v114 = vsel %vm65, %v113, %v72
    %v115 = vrot.slane %v72, 4
    %v116 = vsel %vm65, %v84, %v115
    %v118 = vunpack.c.l.s4 1934713408
    %v119 = vunpack.c.0.s8 %v118
    %v120 = vperm.slane %v114, %v119
    %v122 = vunpack.c.l.s4 1934713408
    %v123 = vunpack.c.0.s8 %v122
    %v124 = vperm.slane %v116, %v123
    %v125 = vrot.slane %v88, 4
    %v126 = vsel %vm65, %v125, %v76
    %v127 = vrot.slane %v76, 4
    %v128 = vsel %vm65, %v88, %v127
    %v130 = vunpack.c.l.s4 1934713408
    %v131 = vunpack.c.0.s8 %v130
    %v132 = vperm.slane %v126, %v131
    %v134 = vunpack.c.l.s4 1934713408
    %v135 = vunpack.c.0.s8 %v134
    %v136 = vperm.slane %v128, %v135
    %v137 = vrot.slane %v108, 4
    %v138 = vsel %vm65, %v137, %v96
    %v139 = vrot.slane %v96, 4
    %v140 = vsel %vm65, %v108, %v139
    %v142 = vunpack.c.l.s4 1934713408
    %v143 = vunpack.c.0.s8 %v142
    %v144 = vperm.slane %v138, %v143
    %v146 = vunpack.c.l.s4 1934713408
    %v147 = vunpack.c.0.s8 %v146
    %v148 = vperm.slane %v140, %v147
    %v149 = vrot.slane %v112, 4
    %v150 = vsel %vm65, %v149, %v100
    %v151 = vrot.slane %v100, 4
    %v152 = vsel %vm65, %v112, %v151
    %v154 = vunpack.c.l.s4 1934713408
    %v155 = vunpack.c.0.s8 %v154
    %v156 = vperm.slane %v150, %v155
    %v158 = vunpack.c.l.s4 1934713408
    %v159 = vunpack.c.0.s8 %v158
    %v160 = vperm.slane %v152, %v159
    %v161 = vrot.slane %v144, 4
    %v162 = vsel %vm65, %v161, %v120
    %v163 = vrot.slane %v120, 4
    %v164 = vsel %vm65, %v144, %v163
    %v165 = vrot.slane %v148, 4
    %v166 = vsel %vm65, %v165, %v124
    %v167 = vrot.slane %v124, 4
    %v168 = vsel %vm65, %v148, %v167
    %v169 = vrot.slane %v156, 4
    %v170 = vsel %vm65, %v169, %v132
    %v171 = vrot.slane %v132, 4
    %v172 = vsel %vm65, %v156, %v171
    %v173 = vrot.slane %v160, 4
    %v174 = vsel %vm65, %v173, %v136
    %v175 = vrot.slane %v136, 4
    %v176 = vsel %vm65, %v160, %v175
    %vm177 = vcmask 15360
    %v178 = vsel %vm177, %v162, 0.0
    %179 = vadd.xlane.f32.xlu0 %v178
    %v180 = vpop.xlane.xlu0 %179
    %v181 = vsel %vm177, %v164, 0.0
    %182 = vadd.xlane.f32.xlu0 %v181
    %v183 = vpop.xlane.xlu0 %182
    %v184 = vsel %vm177, %v166, 0.0
    %185 = vadd.xlane.f32.xlu0 %v184
    %v186 = vpop.xlane.xlu0 %185
    %v187 = vsel %vm177, %v168, 0.0
    %188 = vadd.xlane.f32.xlu0 %v187
    %v189 = vpop.xlane.xlu0 %188
    %v190 = vsel %vm177, %v170, 0.0
    %191 = vadd.xlane.f32.xlu0 %v190
    %v192 = vpop.xlane.xlu0 %191
    %v193 = vsel %vm177, %v172, 0.0
    %194 = vadd.xlane.f32.xlu0 %v193
    %v195 = vpop.xlane.xlu0 %194
    %v196 = vsel %vm177, %v174, 0.0
    %197 = vadd.xlane.f32.xlu0 %v196
    %v198 = vpop.xlane.xlu0 %197
    %v199 = vsel %vm177, %v176, 0.0
    %200 = vadd.xlane.f32.xlu0 %v199
    %v201 = vpop.xlane.xlu0 %200
    %v202 = vmul.f32 %v180, 0.5
    %v203 = vmul.f32 %v183, 0.5
    %v204 = vmul.f32 %v186, 0.5
    %v205 = vmul.f32 %v189, 0.5
    %v206 = vmul.f32 %v192, 0.5
    %v207 = vmul.f32 %v195, 0.5
    %v208 = vmul.f32 %v198, 0.5
    %v209 = vmul.f32 %v201, 0.5
    %v210 = vadd.f32 %v202, 1e-05
    %v211 = vadd.f32 %v203, 1e-05
    %v212 = vadd.f32 %v204, 1e-05
    %v213 = vadd.f32 %v205, 1e-05
    %v214 = vadd.f32 %v206, 1e-05
    %v215 = vadd.f32 %v207, 1e-05
    %v216 = vadd.f32 %v208, 1e-05
    %v217 = vadd.f32 %v209, 1e-05
    %v226 = vlaneseq
    %v227 = vand.u32 %v226, 127
    %v228 = vperm.slane %v210, %v227
    %v229 = vperm.slane %v211, %v227
    %v230 = vperm.slane %v212, %v227
    %v231 = vperm.slane %v213, %v227
    %v232 = vperm.slane %v214, %v227
    %v233 = vperm.slane %v215, %v227
    %v234 = vperm.slane %v216, %v227
    %v235 = vperm.slane %v217, %v227
    %vm236 = vcmask 1041409
    %v237 = vsel %vm236, %v229, %v228
    %vm238 = vcmask 1042434
    %v239 = vsel %vm238, %v230, %v237
    %vm240 = vcmask 1043459
    %v241 = vsel %vm240, %v231, %v239
    %vm242 = vcmask 1044484
    %v243 = vsel %vm242, %v232, %v241
    %vm244 = vcmask 1045509
    %v245 = vsel %vm244, %v233, %v243
    %vm246 = vcmask 1046534
    %v247 = vsel %vm246, %v234, %v245
    %vm248 = vcmask 1047559
    %v249 = vsel %vm248, %v235, %v247
    %v251 = vrcp.pop %v249
    %v252 = vmul.f32 %v249, %v251
    %v253 = vsub.f32 1.0, %v252
    %v254 = vmul.f32 %v251, %v253
    %v255 = vadd.f32 %v251, %v254
    %vm256 = vweird.f32 %v249
    %vm257 = vweird.f32 %v251
    %vm258 = vmor %vm256, %vm257
    %v259 = vsel %vm258, %v251, %v255
    %v260 = vand.u32 2147483647, %v249
    %vm261 = vcmp.eq.f32.partialorder %v260, 8.507059e+37
    %v262 = vand.u32 %v249, 2147483648
    %v263 = vor.u32 1.1754944e-38, %v262
    %v264 = vsel %vm261, %v263, %v259
    %v265 = vmul.f32 %v41, %v264
    %v266 = vmul.f32 %v265, 0.5
    %v267 = vperm.slane %v266, 0
    %v268 = vlaneseq
    %v269 = vshrl.u32 %v268, 7
    %271 = vset.pattern.permute.xlu0 %v269
    %272 = vperm.xlu0 %271, %v267
    %v273 = vpop.permute.xlu0 %272
    %v274 = vperm.slane %v266, 1
    %v275 = vlaneseq
    %v276 = vshrl.u32 %v275, 7
    %278 = vset.pattern.permute.xlu0 %v276
    %279 = vperm.xlu0 %278, %v274
    %v280 = vpop.permute.xlu0 %279
    %v281 = vperm.slane %v266, 2
    %v282 = vlaneseq
    %v283 = vshrl.u32 %v282, 7
    %285 = vset.pattern.permute.xlu0 %v283
    %286 = vperm.xlu0 %285, %v281
    %v287 = vpop.permute.xlu0 %286
    %v288 = vperm.slane %v266, 3
    %v289 = vlaneseq
    %v290 = vshrl.u32 %v289, 7
    %292 = vset.pattern.permute.xlu0 %v290
    %293 = vperm.xlu0 %292, %v288
    %v294 = vpop.permute.xlu0 %293
    %v295 = vperm.slane %v266, 4
    %v296 = vlaneseq
    %v297 = vshrl.u32 %v296, 7
    %299 = vset.pattern.permute.xlu0 %v297
    %300 = vperm.xlu0 %299, %v295
    %v301 = vpop.permute.xlu0 %300
    %v302 = vperm.slane %v266, 5
    %v303 = vlaneseq
    %v304 = vshrl.u32 %v303, 7
    %306 = vset.pattern.permute.xlu0 %v304
    %307 = vperm.xlu0 %306, %v302
    %v308 = vpop.permute.xlu0 %307
    %v309 = vperm.slane %v266, 6
    %v310 = vlaneseq
    %v311 = vshrl.u32 %v310, 7
    %313 = vset.pattern.permute.xlu0 %v311
    %314 = vperm.xlu0 %313, %v309
    %v315 = vpop.permute.xlu0 %314
    %v316 = vperm.slane %v266, 7
    %v317 = vlaneseq
    %v318 = vshrl.u32 %v317, 7
    %320 = vset.pattern.permute.xlu0 %v318
    %321 = vperm.xlu0 %320, %v316
    %v322 = vpop.permute.xlu0 %321
    %v323 = vmul.f32 %v162, %v273
    %v324 = vmul.f32 %v164, %v280
    %v325 = vmul.f32 %v166, %v287
    %v326 = vmul.f32 %v168, %v294
    %v327 = vmul.f32 %v170, %v301
    %v328 = vmul.f32 %v172, %v308
    %v329 = vmul.f32 %v174, %v315
    %v330 = vmul.f32 %v176, %v322
    %v331 = vrot.slane %v325, 4
    %v332 = vsel %vm65, %v331, %v323
    %v333 = vrot.slane %v323, 4
    %v334 = vsel %vm65, %v325, %v333
    %v336 = vunpack.c.l.s4 1983009808
    %v337 = vunpack.c.0.s8 %v336
    %v338 = vperm.slane %v332, %v337
    %v340 = vunpack.c.l.s4 1983009808
    %v341 = vunpack.c.0.s8 %v340
    %v342 = vperm.slane %v334, %v341
    %v343 = vrot.slane %v326, 4
    %v344 = vsel %vm65, %v343, %v324
    %v345 = vrot.slane %v324, 4
    %v346 = vsel %vm65, %v326, %v345
    %v348 = vunpack.c.l.s4 1983009808
    %v349 = vunpack.c.0.s8 %v348
    %v350 = vperm.slane %v344, %v349
    %v352 = vunpack.c.l.s4 1983009808
    %v353 = vunpack.c.0.s8 %v352
    %v354 = vperm.slane %v346, %v353
    %v355 = vrot.slane %v329, 4
    %v356 = vsel %vm65, %v355, %v327
    %v357 = vrot.slane %v327, 4
    %v358 = vsel %vm65, %v329, %v357
    %v360 = vunpack.c.l.s4 1983009808
    %v361 = vunpack.c.0.s8 %v360
    %v362 = vperm.slane %v356, %v361
    %v364 = vunpack.c.l.s4 1983009808
    %v365 = vunpack.c.0.s8 %v364
    %v366 = vperm.slane %v358, %v365
    %v367 = vrot.slane %v330, 4
    %v368 = vsel %vm65, %v367, %v328
    %v369 = vrot.slane %v328, 4
    %v370 = vsel %vm65, %v330, %v369
    %v372 = vunpack.c.l.s4 1983009808
    %v373 = vunpack.c.0.s8 %v372
    %v374 = vperm.slane %v368, %v373
    %v376 = vunpack.c.l.s4 1983009808
    %v377 = vunpack.c.0.s8 %v376
    %v378 = vperm.slane %v370, %v377
    %v379 = vrot.slane %v350, 4
    %v380 = vsel %vm65, %v379, %v338
    %v381 = vrot.slane %v338, 4
    %v382 = vsel %vm65, %v350, %v381
    %v384 = vunpack.c.l.s4 1934713408
    %v385 = vunpack.c.0.s8 %v384
    %v386 = vperm.slane %v380, %v385
    %v388 = vunpack.c.l.s4 1934713408
    %v389 = vunpack.c.0.s8 %v388
    %v390 = vperm.slane %v382, %v389
    %v391 = vrot.slane %v354, 4
    %v392 = vsel %vm65, %v391, %v342
    %v393 = vrot.slane %v342, 4
    %v394 = vsel %vm65, %v354, %v393
    %v396 = vunpack.c.l.s4 1934713408
    %v397 = vunpack.c.0.s8 %v396
    %v398 = vperm.slane %v392, %v397
    %v400 = vunpack.c.l.s4 1934713408
    %v401 = vunpack.c.0.s8 %v400
    %v402 = vperm.slane %v394, %v401
    %v403 = vrot.slane %v374, 4
    %v404 = vsel %vm65, %v403, %v362
    %v405 = vrot.slane %v362, 4
    %v406 = vsel %vm65, %v374, %v405
    %v408 = vunpack.c.l.s4 1934713408
    %v409 = vunpack.c.0.s8 %v408
    %v410 = vperm.slane %v404, %v409
    %v412 = vunpack.c.l.s4 1934713408
    %v413 = vunpack.c.0.s8 %v412
    %v414 = vperm.slane %v406, %v413
    %v415 = vrot.slane %v378, 4
    %v416 = vsel %vm65, %v415, %v366
    %v417 = vrot.slane %v366, 4
    %v418 = vsel %vm65, %v378, %v417
    %v420 = vunpack.c.l.s4 1934713408
    %v421 = vunpack.c.0.s8 %v420
    %v422 = vperm.slane %v416, %v421
    %v424 = vunpack.c.l.s4 1934713408
    %v425 = vunpack.c.0.s8 %v424
    %v426 = vperm.slane %v418, %v425
    %v427 = vrot.slane %v410, 4
    %v428 = vsel %vm65, %v427, %v386
    %v429 = vrot.slane %v386, 4
    %v430 = vsel %vm65, %v410, %v429
    %v431 = vrot.slane %v414, 4
    %v432 = vsel %vm65, %v431, %v390
    %v433 = vrot.slane %v390, 4
    %v434 = vsel %vm65, %v414, %v433
    %v435 = vrot.slane %v422, 4
    %v436 = vsel %vm65, %v435, %v398
    %v437 = vrot.slane %v398, 4
    %v438 = vsel %vm65, %v422, %v437
    %v439 = vrot.slane %v426, 4
    %v440 = vsel %vm65, %v439, %v402
    %v441 = vrot.slane %v402, 4
    %v442 = vsel %vm65, %v426, %v441
    %444 = vrot.lane.b32.xlu0 %v430, 2
    %v445 = vpop.permute.xlu0 %444
    %448 = vrot.lane.b32.xlu0 %v432, 4
    %v449 = vpop.permute.xlu0 %448
    %452 = vrot.lane.b32.xlu0 %v434, 6
    %v453 = vpop.permute.xlu0 %452
    %456 = vrot.lane.b32.xlu0 %v436, 8
    %v457 = vpop.permute.xlu0 %456
    %460 = vrot.lane.b32.xlu0 %v438, 10
    %v461 = vpop.permute.xlu0 %460
    %464 = vrot.lane.b32.xlu0 %v440, 12
    %v465 = vpop.permute.xlu0 %464
    %468 = vrot.lane.b32.xlu0 %v442, 14
    %v469 = vpop.permute.xlu0 %468
    %v471 = vsel %vm177, %v428, %v445
    %vm472 = vcmask 31744
    %v473 = vsel %vm472, %v471, %v449
    %vm474 = vcmask 48128
    %v475 = vsel %vm474, %v473, %v453
    %vm476 = vcmask 64512
    %v477 = vsel %vm476, %v475, %v457
    %vm478 = vcmask 80896
    %v479 = vsel %vm478, %v477, %v461
    %vm480 = vcmask 97280
    %v481 = vsel %vm480, %v479, %v465
    %vm482 = vcmask 113664
    %v483 = vsel %vm482, %v481, %v469
    %vm484 = vcmask 130048
    %485 = vst.msk [vmem:[#allocation7] sm:$0xff] %vm484, %v483
    // Predicated region
    $region18: #{tpu_custom_call.1} parent=1 // pred_check
      _
    $region19: #{tpu_custom_call.1} parent=1 // pred_check_branch
      %487 = sbr.rel (0) target = $region21
    $region20: #{tpu_custom_call.1} parent=1 // pred_region
      %489 = vsyncadd [#allocation4], 0
      %s491 = sshll.u32 [#allocation7], 4
      %s492 = int_to_ptr.vmem [resolvable:$true] %s491
      %s493 = sshll.u32 %s2, 4
      %s494 = int_to_ptr.hbm [resolvable:$true] %s493
      %496 = dma.vmem_to_hbm [thread:$0]  %s492, 128, %s494, [#allocation4]
    $region21: #{tpu_custom_call.1} parent=1 // pred_fallthru
      _
    // Predicated region
    $region22: #{tpu_custom_call.1} parent=1 // pred_check
      _
    $region23: #{tpu_custom_call.1} parent=1 // pred_check_branch
      %498 = sbr.rel (0) target = $region25
    $region24: #{tpu_custom_call.1} parent=1 // pred_region
      %500 = dma.done [#allocation4], 128
    $region25: #{tpu_custom_call.1} parent=1 // pred_fallthru
      _
    %501 = vsyncpa [#allocation3], 1
    %502 = vsyncpa [#allocation6], 1
    %503 = vsyncpa [#allocation4], 1

</llo_original>
